<compile_context>
chip_gen: v7x
topology: tpu7x:2x2x1
jax: 0.10.0
libtpu: 0.0.40
codegen_flags: <defaults>
</compile_context>

<pallas_src>
import functools

import jax
import jax.numpy as jnp
from jax import lax
from jax.experimental import pallas as pl
from jax.experimental.pallas import tpu as pltpu

_EPS = 1e-12              # F.normalize default eps
_EPS_SQ = _EPS * _EPS
_LANE = 128
_SUBLANE = 8


def _round_up(x, m):
    return ((x + m - 1) // m) * m


def _vmem_capacity_bytes():
    try:
        return int(pltpu.get_tpu_info().vmem_capacity_bytes)
    except Exception:      # older jax / query unavailable
        return 64 << 20    # conservative (v7x-sized) default


def _largest_tile(dim_p, per_unit_bytes, budget_bytes, *, keep_two_blocks=False):
    """Largest multiple of 128 dividing `dim_p` (itself a 128-multiple) with
    tile * per_unit_bytes <= budget.  Optionally keeps >= 2 blocks along dim."""
    nblk = dim_p // _LANE
    best = _LANE
    for d in range(1, nblk + 1):
        if nblk % d:
            continue
        if keep_two_blocks and nblk >= 2 and d == nblk:
            continue       # leave at least two i-blocks for megacore sharding
        cand = _LANE * d
        if cand * per_unit_bytes <= budget_bytes:
            best = max(best, cand)
    return best


# ----------------------------------------------------------------------------
# Pre-pass: streaming L2 normalization (optionally writing the block transposed
# so the downstream matmul is a canonical (M,K)@(K,N)).
# ----------------------------------------------------------------------------
def _normalize_kernel(x_ref, o_ref, *, norm_axis, transpose_out):
    x = x_ref[...].astype(jnp.float32)
    inv = lax.rsqrt(jnp.maximum(jnp.sum(x * x, axis=norm_axis, keepdims=True),
                                _EPS_SQ))           # == 1 / max(||x||, eps)
    xn = x * inv
    if transpose_out:
        xn = xn.T
    o_ref[...] = xn.astype(o_ref.dtype)


def _normalize(x, *, norm_axis, transpose_out, out_dtype, vmem_cap):
    R, C = x.shape
    in_isz = jnp.dtype(x.dtype).itemsize
    out_isz = jnp.dtype(out_dtype).itemsize
    budget = min(vmem_cap // 24, 8 << 20)   # f32 working-copy budget per block

    if norm_axis == 0:
        # column-normalize: block over columns, whole R rows per block.
        t = _largest_tile(C, R * 4, budget)
        grid = (C // t,)
        in_spec = pl.BlockSpec((R, t), lambda j: (0, j))
        if transpose_out:
            out_shape = jax.ShapeDtypeStruct((C, R), out_dtype)
            out_spec = pl.BlockSpec((t, R), lambda j: (j, 0))
        else:
            out_shape = jax.ShapeDtypeStruct((R, C), out_dtype)
            out_spec = pl.BlockSpec((R, t), lambda j: (0, j))
        block_elems = R * t
    else:
        # row-normalize: block over rows, whole C columns per block.
        t = _largest_tile(R, C * 4, budget)
        grid = (R // t,)
        in_spec = pl.BlockSpec((t, C), lambda i: (i, 0))
        if transpose_out:
            out_shape = jax.ShapeDtypeStruct((C, R), out_dtype)
            out_spec = pl.BlockSpec((C, t), lambda i: (0, i))
        else:
            out_shape = jax.ShapeDtypeStruct((R, C), out_dtype)
            out_spec = pl.BlockSpec((t, C), lambda i: (i, 0))
        block_elems = t * C

    residency = (2 * block_elems * in_isz        # input block, double-buffered
                 + 2 * block_elems * out_isz     # output block, double-buffered
                 + 3 * block_elems * 4           # f32 working copies
                 + (2 << 20))
    vmem_limit = int(min(max(residency, 16 << 20), vmem_cap - (4 << 20)))

    kernel = functools.partial(_normalize_kernel, norm_axis=norm_axis,
                               transpose_out=transpose_out)
    return pl.pallas_call(
        kernel,
        out_shape=out_shape,
        grid=grid,
        in_specs=[in_spec],
        out_specs=out_spec,
        compiler_params=pltpu.CompilerParams(
            dimension_semantics=("parallel",),
            vmem_limit_bytes=vmem_limit),
    )(x)


# ----------------------------------------------------------------------------
# Correlation partials: for C = lhs @ rhs, accumulate per-i-block
# [||C||_F^2, trace(C), sum(diag(C)^2)] without materializing C.
# ----------------------------------------------------------------------------
def _corr_partials_kernel(a_ref, b_ref, out_ref, acc_ref, *, ti, tj):
    i = pl.program_id(0)
    j = pl.program_id(1)

    @pl.when(j == 0)
    def _init():
        acc_ref[0] = jnp.float32(0.0)
        acc_ref[1] = jnp.float32(0.0)
        acc_ref[2] = jnp.float32(0.0)

    # Native (M,K)@(K,N) MXU matmul, f32 accumulation (bf16 operands by default).
    tile = lax.dot_general(a_ref[...], b_ref[...],
                           (((1,), (0,)), ((), ())),
                           preferred_element_type=jnp.float32)
    acc_ref[0] += jnp.sum(tile * tile)                     # ||C||_F^2 partial

    row0 = i * ti
    col0 = j * tj

    @pl.when(jnp.logical_and(row0 < col0 + tj, col0 < row0 + ti))
    def _diag():   # only tiles the global diagonal actually crosses
        r = lax.broadcasted_iota(jnp.int32, (ti, tj), 0) + row0
        c = lax.broadcasted_iota(jnp.int32, (ti, tj), 1) + col0
        d = jnp.where(r == c, tile, jnp.float32(0.0))
        acc_ref[1] += jnp.sum(d)                           # trace partial
        acc_ref[2] += jnp.sum(d * d)                       # sum(diag^2) partial

    @pl.when(j == pl.num_programs(1) - 1)
    def _flush():  # lane-padded per-i partial row (summed over i in the wrapper)
        lane = lax.broadcasted_iota(jnp.int32, (1, _SUBLANE, _LANE), 2)
        out_ref[...] = (jnp.where(lane == 0, acc_ref[0], 0.0)
                        + jnp.where(lane == 1, acc_ref[1], 0.0)
                        + jnp.where(lane == 2, acc_ref[2], 0.0))


def _pick_blocks(m_p, n_p, k_p, operand_itemsize, vmem_cap):
    tj = 256 if n_p % 256 == 0 else 128
    # Per row of the i-block: double-buffered lhs row + f32 tile/temp rows.
    per_row = 2 * k_p * operand_itemsize + 4 * tj * 4
    # 64 MiB parts (v7x) are megacore: keep >= 2 i-blocks so "parallel" can split.
    keep_two = vmem_cap <= (96 << 20)
    ti = _largest_tile(m_p, per_row, vmem_cap // 4, keep_two_blocks=keep_two)
    return ti, tj


def _make_rhs_spec(block_shape, index_map, depth):
    if depth > 2:
        try:
            return pl.BlockSpec(block_shape, index_map,
                                pipeline_mode=pl.Buffered(depth))
        except Exception:   # pipeline_mode / Buffered unavailable: default 2-deep
            pass
    return pl.BlockSpec(block_shape, index_map)


def _corr_partials(lhs, rhs, *, vmem_cap):
    m_p, k_p = lhs.shape
    k_p2, n_p = rhs.shape
    assert k_p == k_p2
    isz = jnp.dtype(lhs.dtype).itemsize
    ti, tj = _pick_blocks(m_p, n_p, k_p, isz, vmem_cap)
    n_i, n_j = m_p // ti, n_p // tj

    def residency(rhs_depth):
        return (2 * ti * k_p * isz             # lhs block (resident per i), x2 buffers
                + rhs_depth * k_p * tj * isz   # rhs block, multi-buffered
                + 4 * ti * tj * 4              # f32 tile + epilogue temps
                + (2 << 20))                   # compiler-internal scratch headroom

    rhs_depth = 3
    if residency(rhs_depth) > vmem_cap - (8 << 20):
        rhs_depth = 2
    vmem_limit = int(min(max(residency(rhs_depth), 16 << 20),
                         vmem_cap - (4 << 20)))

    kernel = functools.partial(_corr_partials_kernel, ti=ti, tj=tj)
    partials = pl.pallas_call(
        kernel,
        out_shape=jax.ShapeDtypeStruct((n_i, _SUBLANE, _LANE), jnp.float32),
        grid=(n_i, n_j),
        in_specs=[
            pl.BlockSpec((ti, k_p), lambda i, j: (i, 0)),
            _make_rhs_spec((k_p, tj), lambda i, j: (0, j), rhs_depth),
        ],
        out_specs=pl.BlockSpec((1, _SUBLANE, _LANE), lambda i, j: (i, 0, 0)),
        scratch_shapes=[pltpu.SMEM((3,), jnp.float32)],
        compiler_params=pltpu.CompilerParams(
            dimension_semantics=("parallel", "arbitrary"),
            vmem_limit_bytes=vmem_limit),
    )(lhs, rhs)

    frob = jnp.sum(partials[:, 0, 0])
    trace = jnp.sum(partials[:, 0, 1])
    diag_sq = jnp.sum(partials[:, 0, 2])
    return frob, trace, diag_sq


# ----------------------------------------------------------------------------
# Barlow-Twins loss (forward of the PyTorch module; lambda_param is unused by
# the reference forward).
# ----------------------------------------------------------------------------
def barlow_twins_loss(z_a, z_b, *, operand_dtype=jnp.bfloat16):
    assert z_a.shape == z_b.shape and z_a.ndim == 2
    N, D = z_a.shape
    Np, Dp = _round_up(N, _LANE), _round_up(D, _LANE)
    if (Np, Dp) != (N, D):
        pad = ((0, Np - N), (0, Dp - D))
        z_a = jnp.pad(z_a, pad)    # zero rows/cols normalize to exactly 0
        z_b = jnp.pad(z_b, pad)
    vmem_cap = _vmem_capacity_bytes()

    # Pre-pass: normalize once, cast to the streaming dtype, and lay out so both
    # correlation products are native (M,K)@(K,N) matmuls.
    a_cn_t = _normalize(z_a, norm_axis=0, transpose_out=True,
                        out_dtype=operand_dtype, vmem_cap=vmem_cap)   # (Dp, Np)
    b_cn = _normalize(z_b, norm_axis=0, transpose_out=False,
                      out_dtype=operand_dtype, vmem_cap=vmem_cap)     # (Np, Dp)
    a_rn = _normalize(z_a, norm_axis=1, transpose_out=False,
                      out_dtype=operand_dtype, vmem_cap=vmem_cap)     # (Np, Dp)
    b_rn_t = _normalize(z_b, norm_axis=1, transpose_out=True,
                        out_dtype=operand_dtype, vmem_cap=vmem_cap)   # (Dp, Np)

    # twins  = (a_cn_t @ b_cn) / D -> (D, D);  simclr = (a_rn @ b_rn_t) / N -> (N, N)
    t_frob, t_trace, t_dsq = _corr_partials(a_cn_t, b_cn, vmem_cap=vmem_cap)
    s_frob, s_trace, s_dsq = _corr_partials(a_rn, b_rn_t, vmem_cap=vmem_cap)

    inv_d = jnp.float32(1.0 / D)
    inv_n = jnp.float32(1.0 / N)
    positive = s_trace * inv_n + t_trace * inv_d
    twins_neg = (t_frob - t_dsq) * (inv_d * inv_d)
    simclr_neg = (s_frob - s_dsq) * (inv_n * inv_n)
    # TODO(synk): torch `print(positive)` / `print(twins_neg)` side-effect prints omitted.
    return -positive / 10.0 + twins_neg + simclr_neg


def _reference_loss(z_a, z_b, operand_dtype=None):
    """Pure-JAX reference mirroring the PyTorch forward.  `operand_dtype`
    optionally quantizes the normalized operands (to mirror the bf16 path)."""
    za = z_a.astype(jnp.float32)
    zb = z_b.astype(jnp.float32)

    def norm(x, ax):
        xn = x * lax.rsqrt(jnp.maximum(jnp.sum(x * x, axis=ax, keepdims=True),
                                       _EPS_SQ))
        if operand_dtype is not None:
            xn = xn.astype(operand_dtype).astype(jnp.float32)
        return xn

    N, D = za.shape
    za_rn, zb_rn = norm(za, 1), norm(zb, 1)
    za_cn, zb_cn = norm(za, 0), norm(zb, 0)
    hp = lax.Precision.HIGHEST
    twins = jnp.matmul(za_cn.T, zb_cn, precision=hp) / D
    simclr = jnp.matmul(za_rn, zb_rn.T, precision=hp) / N
    positive = jnp.trace(simclr) + jnp.trace(twins)
    twins_neg = jnp.sum((twins - jnp.diag(jnp.diag(twins))) ** 2)
    simclr_neg = jnp.sum((simclr - jnp.diag(jnp.diag(simclr))) ** 2)
    return -positive / 10.0 + twins_neg + simclr_neg


if __name__ == "__main__":
    key = jax.random.PRNGKey(0)
    ka, kb = jax.random.split(key)
    N, D = 8, 32
    z_a = jax.random.normal(ka, (N, D), dtype=jnp.float32)
    z_b = jax.random.normal(kb, (N, D), dtype=jnp.float32)

    # Default path: bf16 operands streamed from HBM, f32 MXU accumulation.
    loss_bf16 = jax.block_until_ready(barlow_twins_loss(z_a, z_b))
    ref_f32 = _reference_loss(z_a, z_b)
    ref_bf16 = _reference_loss(z_a, z_b, operand_dtype=jnp.bfloat16)
    assert jnp.allclose(loss_bf16, ref_bf16, rtol=2e-3, atol=2e-4), (loss_bf16, ref_bf16)
    assert jnp.allclose(loss_bf16, ref_f32, rtol=5e-2, atol=5e-3), (loss_bf16, ref_f32)

    # Full-f32 operand path (tight check against the torch-style reference).
    loss_f32 = jax.block_until_ready(
        barlow_twins_loss(z_a, z_b, operand_dtype=jnp.float32))
    assert jnp.allclose(loss_f32, ref_f32, rtol=2e-4, atol=2e-5), (loss_f32, ref_f32)

    print("KERNEL_OK")
</pallas_src>

<mosaic_0001>
module attributes {stable_mosaic.version = 11 : i64} {
  func.func @_normalize_kernel(%arg0: i32, %arg1: memref<128x128xf32, #tpu.memory_space<vmem>>, %arg2: memref<128x128xbf16, #tpu.memory_space<vmem>>) attributes {dimension_semantics = [#tpu.dimension_semantics<parallel>], iteration_bounds = array<i64: 1>, scalar_prefetch = 0 : i64, scratch_operands = 0 : i64, tpu.core_type = #tpu.core_type<tc>, window_params = [{transform_indices = @transform_0, window_bounds = array<i64: 128, 128>}, {transform_indices = @transform_1, window_bounds = array<i64: 128, 128>}]} {
    %c0 = arith.constant 0 : index
    %c0_0 = arith.constant 0 : index
    %0 = vector.load %arg1[%c0, %c0_0] : memref<128x128xf32, #tpu.memory_space<vmem>>, vector<128x128xf32>
    %1 = arith.mulf %0, %0 : vector<128x128xf32>
    %cst = arith.constant dense<0.000000e+00> : vector<128xf32>
    %2 = vector.multi_reduction <add>, %1, %cst [0] : vector<128x128xf32> to vector<128xf32>
    %3 = vector.shape_cast %2 : vector<128xf32> to vector<1x128xf32>
    %cst_1 = arith.constant 1.000000e-24 : f32
    %4 = vector.broadcast %cst_1 : f32 to vector<1x128xf32>
    %5 = arith.maximumf %3, %4 : vector<1x128xf32>
    %6 = math.rsqrt %5 : vector<1x128xf32>
    %7 = vector.broadcast %6 : vector<1x128xf32> to vector<128x128xf32>
    %8 = arith.mulf %0, %7 : vector<128x128xf32>
    %9 = tpu.transpose %8, [1, 0] : vector<128x128xf32> -> vector<128x128xf32>
    %10 = arith.truncf %9 : vector<128x128xf32> to vector<128x128xbf16>
    %c0_2 = arith.constant 0 : index
    %c0_3 = arith.constant 0 : index
    %11 = vector.load %arg2[%c0_2, %c0_3] : memref<128x128xbf16, #tpu.memory_space<vmem>>, vector<128x128xbf16>
    tpu.vector_store %arg2[%c0_2, %c0_3], %10 {strides = array<i32>} : memref<128x128xbf16, #tpu.memory_space<vmem>>, vector<128x128xbf16>,
    return
  }
  func.func @transform_0(%arg0: i32) -> (i32, i32) {
    %c0_i32 = arith.constant 0 : i32
    %c0_i32_0 = arith.constant 0 : i32
    return %c0_i32, %arg0 : i32, i32
  }
  func.func @transform_1(%arg0: i32) -> (i32, i32) {
    %c0_i32 = arith.constant 0 : i32
    %c0_i32_0 = arith.constant 0 : i32
    return %arg0, %c0_i32 : i32, i32
  }
}

</mosaic_0001>

<llo_original>
// kernel: tpu_custom_call.1
$region0: #{tpu_custom_call.1}
  #allocation0 [shape = 'u32[]', space=smem, size = 0x4, offset = 0x4, fixed_abs, tag = 'smem constant byte address 0x4 - core index']
  #allocation1 [shape = 'u32[144,128]{1,0:T(1,128)}', space=vmem, size = 0x12000, scoped, tag = 'internal scratch']
  %s0 = inlined_call_operand.hbm [shape: f32[128,128], index: 0, kind: input, shape index: {}]
  %s1 = inlined_call_operand.hbm [shape: bf16[128,128], index: 1, kind: output, shape index: {}]
  %s2 = sld [smem:[#allocation0]]
  $region18: #{tpu_custom_call.1} parent=0
    _
  %s4 = ssub.s32 1, %s2
  %s5 = scalar_select 0, %s4, %s2
  $region1: #{tpu_custom_call.1} parent=0
    #allocation2 [shape = 'u8[65536]{0}', space=vmem, size = 0x10000, scoped, tag = 'input window, operand 0, single buffered']
    #allocation3 [shape = 's32[1]{0}', space=sflag, size = 0x4, scoped, tag = 'scoped memory for tpu_custom_call.1']
    #allocation4 [shape = 's32[1]{0}', space=sflag, size = 0x4, scoped, tag = 'scoped memory for tpu_custom_call.1']
    #allocation5 [shape = 'u8[32768]{0}', space=vmem, size = 0x8000, scoped, tag = 'output window, operand 0, single buffered']
    %6 = vsyncpa [#allocation3], 0
    %7 = vsyncpa [#allocation4], 0
    // Predicated region
    $region2: #{tpu_custom_call.1} parent=1 // pred_check
      _
    $region3: #{tpu_custom_call.1} parent=1 // pred_check_branch
      %9 = sbr.rel (0) target = $region5
    $region4: #{tpu_custom_call.1} parent=1 // pred_region
      %s11 = ssub.s32 2048, 2048
      %12 = vsyncadd [#allocation3], %s11
      %s13 = sshll.u32 [#allocation2], 4
      %s14 = int_to_ptr.vmem [resolvable:$true] %s13
      %19 = dma.hbm_to_vmem [thread:$0]  %s0, 2048, %s14, [#allocation3], 128, 128, 8
    $region5: #{tpu_custom_call.1} parent=1 // pred_fallthru
      _
    // Predicated region
    $region6: #{tpu_custom_call.1} parent=1 // pred_check
      _
    $region7: #{tpu_custom_call.1} parent=1 // pred_check_branch
      %21 = sbr.rel (0) target = $region9
    $region8: #{tpu_custom_call.1} parent=1 // pred_region
      %22 = dma.done [#allocation3], 2048
    $region9: #{tpu_custom_call.1} parent=1 // pred_fallthru
      _
    %v23 = vld [vmem:[#allocation2] sm:$0xff]
    %v24 = vld [vmem:[#allocation2 + $0x8] sm:$0xff]
    %v25 = vld [vmem:[#allocation2 + $0x10] sm:$0xff]
    %v26 = vld [vmem:[#allocation2 + $0x18] sm:$0xff]
    %v27 = vld [vmem:[#allocation2 + $0x20] sm:$0xff]
    %v28 = vld [vmem:[#allocation2 + $0x28] sm:$0xff]
    %v29 = vld [vmem:[#allocation2 + $0x30] sm:$0xff]
    %v30 = vld [vmem:[#allocation2 + $0x38] sm:$0xff]
    %v31 = vld [vmem:[#allocation2 + $0x40] sm:$0xff]
    %v32 = vld [vmem:[#allocation2 + $0x48] sm:$0xff]
    %v33 = vld [vmem:[#allocation2 + $0x50] sm:$0xff]
    %v34 = vld [vmem:[#allocation2 + $0x58] sm:$0xff]
    %v35 = vld [vmem:[#allocation2 + $0x60] sm:$0xff]
    %v36 = vld [vmem:[#allocation2 + $0x68] sm:$0xff]
    %v37 = vld [vmem:[#allocation2 + $0x70] sm:$0xff]
    %v38 = vld [vmem:[#allocation2 + $0x78] sm:$0xff]
    %v39 = vmul.f32 %v23, %v23
    %v40 = vmul.f32 %v24, %v24
    %v41 = vmul.f32 %v25, %v25
    %v42 = vmul.f32 %v26, %v26
    %v43 = vmul.f32 %v27, %v27
    %v44 = vmul.f32 %v28, %v28
    %v45 = vmul.f32 %v29, %v29
    %v46 = vmul.f32 %v30, %v30
    %v47 = vmul.f32 %v31, %v31
    %v48 = vmul.f32 %v32, %v32
    %v49 = vmul.f32 %v33, %v33
    %v50 = vmul.f32 %v34, %v34
    %v51 = vmul.f32 %v35, %v35
    %v52 = vmul.f32 %v36, %v36
    %v53 = vmul.f32 %v37, %v37
    %v54 = vmul.f32 %v38, %v38
    %v55 = vadd.f32 %v39, %v40
    %v56 = vadd.f32 %v55, %v41
    %v57 = vadd.f32 %v56, %v42
    %v58 = vadd.f32 %v57, %v43
    %v59 = vadd.f32 %v58, %v44
    %v60 = vadd.f32 %v59, %v45
    %v61 = vadd.f32 %v60, %v46
    %v62 = vadd.f32 %v61, %v47
    %v63 = vadd.f32 %v62, %v48
    %v64 = vadd.f32 %v63, %v49
    %v65 = vadd.f32 %v64, %v50
    %v66 = vadd.f32 %v65, %v51
    %v67 = vadd.f32 %v66, %v52
    %v68 = vadd.f32 %v67, %v53
    %v69 = vadd.f32 %v68, %v54
    %v70 = vrot.slane %v69, 4
    %v71 = vadd.f32 %v69, %v70
    %v72 = vrot.slane %v71, 2
    %v73 = vadd.f32 %v71, %v72
    %v74 = vrot.slane %v73, 1
    %v75 = vadd.f32 %v73, %v74
    %v76 = vmax.f32 %v75, 1e-24
    %v77 = vrsqrt.pop %v76
    %v78 = vmul.f32 %v23, %v77
    %v79 = vmul.f32 %v24, %v77
    %v80 = vmul.f32 %v25, %v77
    %v81 = vmul.f32 %v26, %v77
    %v82 = vmul.f32 %v27, %v77
    %v83 = vmul.f32 %v28, %v77
    %v84 = vmul.f32 %v29, %v77
    %v85 = vmul.f32 %v30, %v77
    %v86 = vmul.f32 %v31, %v77
    %v87 = vmul.f32 %v32, %v77
    %v88 = vmul.f32 %v33, %v77
    %v89 = vmul.f32 %v34, %v77
    %v90 = vmul.f32 %v35, %v77
    %v91 = vmul.f32 %v36, %v77
    %v92 = vmul.f32 %v37, %v77
    %v93 = vmul.f32 %v38, %v77
    %94 = vxpose.xlu0.b32.start [1/16] %v78, 128
    %95 = vxpose.xlu0.b32.cont [2/16] %v79, 128
    %96 = vxpose.xlu0.b32.cont [3/16] %v80, 128
    %97 = vxpose.xlu0.b32.cont [4/16] %v81, 128
    %98 = vxpose.xlu0.b32.cont [5/16] %v82, 128
    %99 = vxpose.xlu0.b32.cont [6/16] %v83, 128
    %100 = vxpose.xlu0.b32.cont [7/16] %v84, 128
    %101 = vxpose.xlu0.b32.cont [8/16] %v85, 128
    %102 = vxpose.xlu0.b32.cont [9/16] %v86, 128
    %103 = vxpose.xlu0.b32.cont [10/16] %v87, 128
    %104 = vxpose.xlu0.b32.cont [11/16] %v88, 128
    %105 = vxpose.xlu0.b32.cont [12/16] %v89, 128
    %106 = vxpose.xlu0.b32.cont [13/16] %v90, 128
    %107 = vxpose.xlu0.b32.cont [14/16] %v91, 128
    %108 = vxpose.xlu0.b32.cont [15/16] %v92, 128
    %109 = vxpose.xlu0.b32.end [16/16] %v93, 128
    %v110 = vpop.trf.xlu0
    %v111 = vpop.trf.xlu0
    %v112 = vpop.trf.xlu0
    %v113 = vpop.trf.xlu0
    %v114 = vpop.trf.xlu0
    %v115 = vpop.trf.xlu0
    %v116 = vpop.trf.xlu0
    %v117 = vpop.trf.xlu0
    %v118 = vpop.trf.xlu0
    %v119 = vpop.trf.xlu0
    %v120 = vpop.trf.xlu0
    %v121 = vpop.trf.xlu0
    %v122 = vpop.trf.xlu0
    %v123 = vpop.trf.xlu0
    %v124 = vpop.trf.xlu0
    %v125 = vpop.trf.xlu0
    %v126 = vpack.c.bf16 %v111, %v110
    %v127 = vpack.c.bf16 %v113, %v112
    %v128 = vpack.c.bf16 %v115, %v114
    %v129 = vpack.c.bf16 %v117, %v116
    %v130 = vpack.c.bf16 %v119, %v118
    %v131 = vpack.c.bf16 %v121, %v120
    %v132 = vpack.c.bf16 %v123, %v122
    %v133 = vpack.c.bf16 %v125, %v124
    %v142 = vunpack.c.l.b16 %v126
    %v143 = vunpack.c.h.b16 %v126
    %v144 = vunpack.c.l.b16 %v127
    %v145 = vunpack.c.h.b16 %v127
    %v146 = vunpack.c.l.b16 %v128
    %v147 = vunpack.c.h.b16 %v128
    %v148 = vunpack.c.l.b16 %v129
    %v149 = vunpack.c.h.b16 %v129
    %v150 = vunpack.c.l.b16 %v130
    %v151 = vunpack.c.h.b16 %v130
    %v152 = vunpack.c.l.b16 %v131
    %v153 = vunpack.c.h.b16 %v131
    %v154 = vunpack.c.l.b16 %v132
    %v155 = vunpack.c.h.b16 %v132
    %v156 = vunpack.c.l.b16 %v133
    %v157 = vunpack.c.h.b16 %v133
    %v158 = vpack.c.b16 %v142, %v142
    %v159 = vpack.c.b16 %v143, %v143
    %v160 = vpack.c.b16 %v144, %v144
    %v161 = vpack.c.b16 %v145, %v145
    %v162 = vpack.c.b16 %v146, %v146
    %v163 = vpack.c.b16 %v147, %v147
    %v164 = vpack.c.b16 %v148, %v148
    %v165 = vpack.c.b16 %v149, %v149
    %v166 = vpack.c.b16 %v150, %v150
    %v167 = vpack.c.b16 %v151, %v151
    %v168 = vpack.c.b16 %v152, %v152
    %v169 = vpack.c.b16 %v153, %v153
    %v170 = vpack.c.b16 %v154, %v154
    %v171 = vpack.c.b16 %v155, %v155
    %v172 = vpack.c.b16 %v156, %v156
    %v173 = vpack.c.b16 %v157, %v157
    %190 = vst [vmem:[#allocation5] sm:$0xf] %v158
    %191 = vst [vmem:[#allocation5 + $0x4] sm:$0xf] %v159
    %192 = vst [vmem:[#allocation5 + $0x8] sm:$0xf] %v160
    %193 = vst [vmem:[#allocation5 + $0xc] sm:$0xf] %v161
    %194 = vst [vmem:[#allocation5 + $0x10] sm:$0xf] %v162
    %195 = vst [vmem:[#allocation5 + $0x14] sm:$0xf] %v163
    %196 = vst [vmem:[#allocation5 + $0x18] sm:$0xf] %v164
    %197 = vst [vmem:[#allocation5 + $0x1c] sm:$0xf] %v165
    %198 = vst [vmem:[#allocation5 + $0x20] sm:$0xf] %v166
    %199 = vst [vmem:[#allocation5 + $0x24] sm:$0xf] %v167
    %200 = vst [vmem:[#allocation5 + $0x28] sm:$0xf] %v168
    %201 = vst [vmem:[#allocation5 + $0x2c] sm:$0xf] %v169
    %202 = vst [vmem:[#allocation5 + $0x30] sm:$0xf] %v170
    %203 = vst [vmem:[#allocation5 + $0x34] sm:$0xf] %v171
    %204 = vst [vmem:[#allocation5 + $0x38] sm:$0xf] %v172
    %205 = vst [vmem:[#allocation5 + $0x3c] sm:$0xf] %v173
    // Predicated region
    $region10: #{tpu_custom_call.1} parent=1 // pred_check
      _
    $region11: #{tpu_custom_call.1} parent=1 // pred_check_branch
      %207 = sbr.rel (0) target = $region13
    $region12: #{tpu_custom_call.1} parent=1 // pred_region
      %s209 = ssub.s32 1024, 1024
      %210 = vsyncadd [#allocation4], %s209
      %s211 = sshll.u32 [#allocation5], 4
      %s212 = int_to_ptr.vmem [resolvable:$true] %s211
      %217 = dma.vmem_to_hbm [thread:$0]  %s212, 1024, %s1, [#allocation4], 64, 64, 4
    $region13: #{tpu_custom_call.1} parent=1 // pred_fallthru
      _
    // Predicated region
    $region14: #{tpu_custom_call.1} parent=1 // pred_check
      _
    $region15: #{tpu_custom_call.1} parent=1 // pred_check_branch
      %219 = sbr.rel (0) target = $region17
    $region16: #{tpu_custom_call.1} parent=1 // pred_region
      %220 = dma.done [#allocation4], 1024
    $region17: #{tpu_custom_call.1} parent=1 // pred_fallthru
      _
    %221 = vsyncpa [#allocation3], 1
    %222 = vsyncpa [#allocation4], 1

</llo_original>
